<compile_context>
chip_gen: v6e
topology: v6e:2x2x1
jax: 0.10.0
libtpu: 0.0.40
codegen_flags: <defaults>
</compile_context>

<pallas_src>
import numpy as np
import jax
import jax.numpy as jnp
from jax.experimental import pallas as pl
from jax.experimental.pallas import tpu as pltpu


def make_kernel_np(k):
    """NumPy twin of gpen_model.make_kernel (static buffer)."""
    k = np.asarray(k, dtype=np.float32)
    if k.ndim == 1:
        k = np.outer(k, k)
    k = k / k.sum()
    return k


def _round_up(x, m):
    return -(-x // m) * m


def _sublane_tile(dtype):
    item = jnp.dtype(dtype).itemsize
    return {4: 8, 2: 16, 1: 32}.get(item, 8)


def _padded_block_bytes(lead, sub, lane, dtype):
    """VMEM bytes of a block after (sublane, lane) layout padding."""
    item = jnp.dtype(dtype).itemsize
    return (lead
            * _round_up(max(sub, 1), _sublane_tile(dtype))
            * _round_up(max(lane, 1), 128)
            * item)


def _vmem_capacity_bytes():
    try:
        return int(pltpu.get_tpu_info().vmem_capacity_bytes)
    except Exception:
        return 64 << 20  # conservative (v7x per-TensorCore size)


def _choose_lane_tile(R, d, Hph, Wph, Hout, Wout, dtype, block_budget):
    """Pick (R_pad, TR): lane padding + lane-tile size, layout-padding aware."""
    if R < 128:
        # Tiny channel count: keep the full (8-aligned) lane extent; padding
        # all the way to 128 lanes would only move zeros (mem-bound kernel).
        rp = _round_up(R, 8)
        return rp, rp

    def fits(tr):
        in_b = _padded_block_bytes(d * d * Hph, Wph, tr, dtype)
        out_b = _padded_block_bytes(Hout, Wout, tr, dtype)
        acc_b = 2 * _padded_block_bytes(Hout, Wout, tr, jnp.float32)  # acc + tap
        return 2 * (in_b + out_b) + acc_b <= block_budget  # double-buffered

    tr_max = _round_up(R, 128)
    tr = 128
    while tr * 2 <= tr_max and fits(tr * 2):
        tr *= 2
    # Prefer >= 2 grid steps so both v7x TensorCores get balanced work; the
    # extra step costs ~0.35us on single-TC v5e/v6e, i.e. noise at this size.
    if tr >= 256 and _round_up(R, tr) // tr < 2:
        tr //= 2
    return _round_up(R, tr), tr


def _make_downsample_kernel(d, K, Q, Hout, Wout, wflip):
    """Build the Pallas kernel body (all shapes / FIR weights are static)."""

    def kernel(ph_ref, out_ref):
        # ph_ref : (d*d, Hph, Wph, TR) VMEM block of phase planes (R on lanes)
        # out_ref: (Hout, Wout, TR)    VMEM block
        acc = jnp.zeros(out_ref.shape, jnp.float32)
        for ry in range(d):
            for rx in range(d):
                p = ry * d + rx
                for qy in range(Q):
                    ky = d * qy + ry
                    if ky >= K:
                        continue
                    for qx in range(Q):
                        kx = d * qx + rx
                        if kx >= K:
                            continue
                        w = wflip[ky][kx]  # compile-time python float
                        if w == 0.0:
                            continue
                        # Contiguous slice: offsets only on leading/sublane
                        # axes, lanes untouched. Upcast per tap, not per plane.
                        tap = ph_ref[p, qy:qy + Hout, qx:qx + Wout, :]
                        acc = acc + w * tap.astype(jnp.float32)
        out_ref[...] = acc.astype(out_ref.dtype)  # single lane-dense store

    return kernel


def upfirdn2d_downsample(x, k2d, factor, pad):
    """upfirdn2d(x, k2d, up=1, down=factor, pad=pad) via Pallas."""
    N, C, H, W = x.shape
    d = int(factor)
    K = int(k2d.shape[0])
    pad0, pad1 = int(pad[0]), int(pad[1])
    R = N * C

    # Channels-last (lane-dense) layout: (H, W, N*C).
    x3 = jnp.transpose(x.reshape(R, H, W), (1, 2, 0))
    # Zero-pad (positive) / crop (negative) exactly like upfirdn2d_native.
    xp = jnp.pad(x3, ((max(pad0, 0), max(pad1, 0)),
                      (max(pad0, 0), max(pad1, 0)),
                      (0, 0)))
    xp = xp[max(-pad0, 0): xp.shape[0] - max(-pad1, 0),
            max(-pad0, 0): xp.shape[1] - max(-pad1, 0), :]
    Hp, Wp = xp.shape[0], xp.shape[1]
    Hout = (Hp - K) // d + 1
    Wout = (Wp - K) // d + 1
    assert Hout > 0 and Wout > 0, (Hout, Wout)
    Q = -(-K // d)                      # taps per phase along each spatial axis
    Hph, Wph = Hout + Q - 1, Wout + Q - 1

    # VMEM budget from real chip capacity; account for layout padding.
    cap = _vmem_capacity_bytes()
    vmem_limit = min(100 << 20, (cap * 3) // 4)
    block_budget = vmem_limit // 2       # leave headroom for temporaries
    R_pad, TR = _choose_lane_tile(R, d, Hph, Wph, Hout, Wout, x.dtype,
                                  block_budget)
    xp = jnp.pad(xp, ((0, 0), (0, 0), (0, R_pad - R)))

    # Phase decomposition of the strided down-sample; this rides on the same
    # XLA producer pass as the unavoidable transpose/pad, and
    # allow_input_fusion lets XLA fuse it into the pallas_call operand.
    planes = []
    for ry in range(d):
        for rx in range(d):
            ph = xp[ry::d, rx::d, :]
            ph = ph[:Hph, :Wph, :]
            ph = jnp.pad(ph, ((0, Hph - ph.shape[0]),
                              (0, Wph - ph.shape[1]),
                              (0, 0)))
            planes.append(ph)
    phases = jnp.stack(planes, axis=0)   # (d*d, Hph, Wph, R_pad)

    # True convolution == correlation with the flipped kernel (upfirdn2d).
    wflip = [[float(k2d[K - 1 - ky, K - 1 - kx]) for kx in range(K)]
             for ky in range(K)]

    kernel = _make_downsample_kernel(d, K, Q, Hout, Wout, wflip)
    grid = (R_pad // TR,)
    out3 = pl.pallas_call(
        kernel,
        out_shape=jax.ShapeDtypeStruct((Hout, Wout, R_pad), x.dtype),
        grid=grid,
        in_specs=[pl.BlockSpec((d * d, Hph, Wph, TR),
                               lambda i: (0, 0, 0, i))],
        out_specs=pl.BlockSpec((Hout, Wout, TR), lambda i: (0, 0, i)),
        compiler_params=pltpu.CompilerParams(
            dimension_semantics=("parallel",),
            vmem_limit_bytes=vmem_limit,
            allow_input_fusion=[True],
        ),
    )(phases)

    out3 = out3[:, :, :R]
    return jnp.transpose(out3, (2, 0, 1)).reshape(N, C, Hout, Wout)


def downsample(x, blur_kernel=(1, 3, 3, 1), factor=2):
    """Pallas implementation of Downsample.forward."""
    k2d = make_kernel_np(blur_kernel)
    K = k2d.shape[0]
    p = K - factor
    pad = ((p + 1) // 2, p // 2)
    return upfirdn2d_downsample(x, k2d, factor, pad)


def _reference_downsample(x, blur_kernel=(1, 3, 3, 1), factor=2):
    """Pure-JAX reference: direct strided-slice implementation of the
    upfirdn2d down path (independent of the phase decomposition)."""
    k2d = make_kernel_np(blur_kernel)
    K = k2d.shape[0]
    p = K - factor
    pad0, pad1 = (p + 1) // 2, p // 2
    xp = jnp.pad(x, ((0, 0), (0, 0),
                     (max(pad0, 0), max(pad1, 0)),
                     (max(pad0, 0), max(pad1, 0))))
    xp = xp[:, :,
            max(-pad0, 0): xp.shape[2] - max(-pad1, 0),
            max(-pad0, 0): xp.shape[3] - max(-pad1, 0)]
    Hp, Wp = xp.shape[2], xp.shape[3]
    Hout = (Hp - K) // factor + 1
    Wout = (Wp - K) // factor + 1
    out = jnp.zeros((x.shape[0], x.shape[1], Hout, Wout), jnp.float32)
    for ky in range(K):
        for kx in range(K):
            w = float(k2d[K - 1 - ky, K - 1 - kx])
            tap = xp[:, :,
                     ky: ky + factor * (Hout - 1) + 1: factor,
                     kx: kx + factor * (Wout - 1) + 1: factor]
            out = out + w * tap.astype(jnp.float32)
    return out.astype(x.dtype)


if __name__ == "__main__":
    N, C, H, W = 2, 4, 16, 16
    key = jax.random.PRNGKey(0)
    x = jax.random.normal(key, (N, C, H, W), dtype=jnp.float32)

    out = jax.block_until_ready(downsample(x, blur_kernel=(1, 3, 3, 1), factor=2))
    ref = jax.block_until_ready(_reference_downsample(x, (1, 3, 3, 1), 2))
    assert out.shape == (N, C, H // 2, W // 2), out.shape
    assert jnp.allclose(out, ref, atol=1e-5, rtol=1e-5), (
        float(jnp.max(jnp.abs(out - ref))))

    # Odd spatial size, tiny channel count (exercises lane padding / cropping).
    x2 = jax.random.normal(jax.random.PRNGKey(1), (1, 3, 15, 15), jnp.float32)
    out2 = jax.block_until_ready(downsample(x2))
    ref2 = jax.block_until_ready(_reference_downsample(x2))
    assert out2.shape == ref2.shape, (out2.shape, ref2.shape)
    assert jnp.allclose(out2, ref2, atol=1e-5, rtol=1e-5), (
        float(jnp.max(jnp.abs(out2 - ref2))))

    # bf16 path (per-tap upcast, f32 accumulation).
    xb = x.astype(jnp.bfloat16)
    outb = jax.block_until_ready(downsample(xb))
    refb = jax.block_until_ready(_reference_downsample(xb))
    assert jnp.allclose(outb.astype(jnp.float32), refb.astype(jnp.float32),
                        atol=3e-2, rtol=3e-2), (
        float(jnp.max(jnp.abs(outb.astype(jnp.float32)
                              - refb.astype(jnp.float32)))))

    print("KERNEL_OK")
</pallas_src>

<mosaic_0001>
module attributes {stable_mosaic.version = 11 : i64} {
  func.func @kernel(%arg0: i32, %arg1: memref<4x9x9x8xf32, #tpu.memory_space<vmem>>, %arg2: memref<8x8x8xf32, #tpu.memory_space<vmem>>) attributes {dimension_semantics = [#tpu.dimension_semantics<parallel>], iteration_bounds = array<i64: 1>, scalar_prefetch = 0 : i64, scratch_operands = 0 : i64, tpu.core_type = #tpu.core_type<tc>, window_params = [{transform_indices = @transform_0, window_bounds = array<i64: 4, 9, 9, 8>}, {transform_indices = @transform_1, window_bounds = array<i64: 8, 8, 8>}]} {
    %cst = arith.constant 0.000000e+00 : f32
    %0 = vector.broadcast %cst : f32 to vector<8x8x8xf32>
    %c0 = arith.constant 0 : index
    %c0_0 = arith.constant 0 : index
    %c0_1 = arith.constant 0 : index
    %c0_2 = arith.constant 0 : index
    %1 = vector.load %arg1[%c0, %c0_0, %c0_1, %c0_2] : memref<4x9x9x8xf32, #tpu.memory_space<vmem>>, vector<1x8x8x8xf32>
    %2 = vector.shape_cast %1 : vector<1x8x8x8xf32> to vector<8x8x8xf32>
    %cst_3 = arith.constant 1.562500e-02 : f32
    %3 = vector.broadcast %cst_3 : f32 to vector<8x8x8xf32>
    %4 = arith.mulf %3, %2 : vector<8x8x8xf32>
    %5 = arith.addf %0, %4 : vector<8x8x8xf32>
    %c0_4 = arith.constant 0 : index
    %c0_5 = arith.constant 0 : index
    %c1 = arith.constant 1 : index
    %c0_6 = arith.constant 0 : index
    %6 = vector.load %arg1[%c0_4, %c0_5, %c1, %c0_6] : memref<4x9x9x8xf32, #tpu.memory_space<vmem>>, vector<1x8x8x8xf32>
    %7 = vector.shape_cast %6 : vector<1x8x8x8xf32> to vector<8x8x8xf32>
    %cst_7 = arith.constant 4.687500e-02 : f32
    %8 = vector.broadcast %cst_7 : f32 to vector<8x8x8xf32>
    %9 = arith.mulf %8, %7 : vector<8x8x8xf32>
    %10 = arith.addf %5, %9 : vector<8x8x8xf32>
    %c0_8 = arith.constant 0 : index
    %c1_9 = arith.constant 1 : index
    %c0_10 = arith.constant 0 : index
    %c0_11 = arith.constant 0 : index
    %11 = vector.load %arg1[%c0_8, %c1_9, %c0_10, %c0_11] : memref<4x9x9x8xf32, #tpu.memory_space<vmem>>, vector<1x8x8x8xf32>
    %12 = vector.shape_cast %11 : vector<1x8x8x8xf32> to vector<8x8x8xf32>
    %cst_12 = arith.constant 4.687500e-02 : f32
    %13 = vector.broadcast %cst_12 : f32 to vector<8x8x8xf32>
    %14 = arith.mulf %13, %12 : vector<8x8x8xf32>
    %15 = arith.addf %10, %14 : vector<8x8x8xf32>
    %c0_13 = arith.constant 0 : index
    %c1_14 = arith.constant 1 : index
    %c1_15 = arith.constant 1 : index
    %c0_16 = arith.constant 0 : index
    %16 = vector.load %arg1[%c0_13, %c1_14, %c1_15, %c0_16] : memref<4x9x9x8xf32, #tpu.memory_space<vmem>>, vector<1x8x8x8xf32>
    %17 = vector.shape_cast %16 : vector<1x8x8x8xf32> to vector<8x8x8xf32>
    %cst_17 = arith.constant 1.406250e-01 : f32
    %18 = vector.broadcast %cst_17 : f32 to vector<8x8x8xf32>
    %19 = arith.mulf %18, %17 : vector<8x8x8xf32>
    %20 = arith.addf %15, %19 : vector<8x8x8xf32>
    %c1_18 = arith.constant 1 : index
    %c0_19 = arith.constant 0 : index
    %c0_20 = arith.constant 0 : index
    %c0_21 = arith.constant 0 : index
    %21 = vector.load %arg1[%c1_18, %c0_19, %c0_20, %c0_21] : memref<4x9x9x8xf32, #tpu.memory_space<vmem>>, vector<1x8x8x8xf32>
    %22 = vector.shape_cast %21 : vector<1x8x8x8xf32> to vector<8x8x8xf32>
    %cst_22 = arith.constant 4.687500e-02 : f32
    %23 = vector.broadcast %cst_22 : f32 to vector<8x8x8xf32>
    %24 = arith.mulf %23, %22 : vector<8x8x8xf32>
    %25 = arith.addf %20, %24 : vector<8x8x8xf32>
    %c1_23 = arith.constant 1 : index
    %c0_24 = arith.constant 0 : index
    %c1_25 = arith.constant 1 : index
    %c0_26 = arith.constant 0 : index
    %26 = vector.load %arg1[%c1_23, %c0_24, %c1_25, %c0_26] : memref<4x9x9x8xf32, #tpu.memory_space<vmem>>, vector<1x8x8x8xf32>
    %27 = vector.shape_cast %26 : vector<1x8x8x8xf32> to vector<8x8x8xf32>
    %cst_27 = arith.constant 1.562500e-02 : f32
    %28 = vector.broadcast %cst_27 : f32 to vector<8x8x8xf32>
    %29 = arith.mulf %28, %27 : vector<8x8x8xf32>
    %30 = arith.addf %25, %29 : vector<8x8x8xf32>
    %c1_28 = arith.constant 1 : index
    %c1_29 = arith.constant 1 : index
    %c0_30 = arith.constant 0 : index
    %c0_31 = arith.constant 0 : index
    %31 = vector.load %arg1[%c1_28, %c1_29, %c0_30, %c0_31] : memref<4x9x9x8xf32, #tpu.memory_space<vmem>>, vector<1x8x8x8xf32>
    %32 = vector.shape_cast %31 : vector<1x8x8x8xf32> to vector<8x8x8xf32>
    %cst_32 = arith.constant 1.406250e-01 : f32
    %33 = vector.broadcast %cst_32 : f32 to vector<8x8x8xf32>
    %34 = arith.mulf %33, %32 : vector<8x8x8xf32>
    %35 = arith.addf %30, %34 : vector<8x8x8xf32>
    %c1_33 = arith.constant 1 : index
    %c1_34 = arith.constant 1 : index
    %c1_35 = arith.constant 1 : index
    %c0_36 = arith.constant 0 : index
    %36 = vector.load %arg1[%c1_33, %c1_34, %c1_35, %c0_36] : memref<4x9x9x8xf32, #tpu.memory_space<vmem>>, vector<1x8x8x8xf32>
    %37 = vector.shape_cast %36 : vector<1x8x8x8xf32> to vector<8x8x8xf32>
    %cst_37 = arith.constant 4.687500e-02 : f32
    %38 = vector.broadcast %cst_37 : f32 to vector<8x8x8xf32>
    %39 = arith.mulf %38, %37 : vector<8x8x8xf32>
    %40 = arith.addf %35, %39 : vector<8x8x8xf32>
    %c2 = arith.constant 2 : index
    %c0_38 = arith.constant 0 : index
    %c0_39 = arith.constant 0 : index
    %c0_40 = arith.constant 0 : index
    %41 = vector.load %arg1[%c2, %c0_38, %c0_39, %c0_40] : memref<4x9x9x8xf32, #tpu.memory_space<vmem>>, vector<1x8x8x8xf32>
    %42 = vector.shape_cast %41 : vector<1x8x8x8xf32> to vector<8x8x8xf32>
    %cst_41 = arith.constant 4.687500e-02 : f32
    %43 = vector.broadcast %cst_41 : f32 to vector<8x8x8xf32>
    %44 = arith.mulf %43, %42 : vector<8x8x8xf32>
    %45 = arith.addf %40, %44 : vector<8x8x8xf32>
    %c2_42 = arith.constant 2 : index
    %c0_43 = arith.constant 0 : index
    %c1_44 = arith.constant 1 : index
    %c0_45 = arith.constant 0 : index
    %46 = vector.load %arg1[%c2_42, %c0_43, %c1_44, %c0_45] : memref<4x9x9x8xf32, #tpu.memory_space<vmem>>, vector<1x8x8x8xf32>
    %47 = vector.shape_cast %46 : vector<1x8x8x8xf32> to vector<8x8x8xf32>
    %cst_46 = arith.constant 1.406250e-01 : f32
    %48 = vector.broadcast %cst_46 : f32 to vector<8x8x8xf32>
    %49 = arith.mulf %48, %47 : vector<8x8x8xf32>
    %50 = arith.addf %45, %49 : vector<8x8x8xf32>
    %c2_47 = arith.constant 2 : index
    %c1_48 = arith.constant 1 : index
    %c0_49 = arith.constant 0 : index
    %c0_50 = arith.constant 0 : index
    %51 = vector.load %arg1[%c2_47, %c1_48, %c0_49, %c0_50] : memref<4x9x9x8xf32, #tpu.memory_space<vmem>>, vector<1x8x8x8xf32>
    %52 = vector.shape_cast %51 : vector<1x8x8x8xf32> to vector<8x8x8xf32>
    %cst_51 = arith.constant 1.562500e-02 : f32
    %53 = vector.broadcast %cst_51 : f32 to vector<8x8x8xf32>
    %54 = arith.mulf %53, %52 : vector<8x8x8xf32>
    %55 = arith.addf %50, %54 : vector<8x8x8xf32>
    %c2_52 = arith.constant 2 : index
    %c1_53 = arith.constant 1 : index
    %c1_54 = arith.constant 1 : index
    %c0_55 = arith.constant 0 : index
    %56 = vector.load %arg1[%c2_52, %c1_53, %c1_54, %c0_55] : memref<4x9x9x8xf32, #tpu.memory_space<vmem>>, vector<1x8x8x8xf32>
    %57 = vector.shape_cast %56 : vector<1x8x8x8xf32> to vector<8x8x8xf32>
    %cst_56 = arith.constant 4.687500e-02 : f32
    %58 = vector.broadcast %cst_56 : f32 to vector<8x8x8xf32>
    %59 = arith.mulf %58, %57 : vector<8x8x8xf32>
    %60 = arith.addf %55, %59 : vector<8x8x8xf32>
    %c3 = arith.constant 3 : index
    %c0_57 = arith.constant 0 : index
    %c0_58 = arith.constant 0 : index
    %c0_59 = arith.constant 0 : index
    %61 = vector.load %arg1[%c3, %c0_57, %c0_58, %c0_59] : memref<4x9x9x8xf32, #tpu.memory_space<vmem>>, vector<1x8x8x8xf32>
    %62 = vector.shape_cast %61 : vector<1x8x8x8xf32> to vector<8x8x8xf32>
    %cst_60 = arith.constant 1.406250e-01 : f32
    %63 = vector.broadcast %cst_60 : f32 to vector<8x8x8xf32>
    %64 = arith.mulf %63, %62 : vector<8x8x8xf32>
    %65 = arith.addf %60, %64 : vector<8x8x8xf32>
    %c3_61 = arith.constant 3 : index
    %c0_62 = arith.constant 0 : index
    %c1_63 = arith.constant 1 : index
    %c0_64 = arith.constant 0 : index
    %66 = vector.load %arg1[%c3_61, %c0_62, %c1_63, %c0_64] : memref<4x9x9x8xf32, #tpu.memory_space<vmem>>, vector<1x8x8x8xf32>
    %67 = vector.shape_cast %66 : vector<1x8x8x8xf32> to vector<8x8x8xf32>
    %cst_65 = arith.constant 4.687500e-02 : f32
    %68 = vector.broadcast %cst_65 : f32 to vector<8x8x8xf32>
    %69 = arith.mulf %68, %67 : vector<8x8x8xf32>
    %70 = arith.addf %65, %69 : vector<8x8x8xf32>
    %c3_66 = arith.constant 3 : index
    %c1_67 = arith.constant 1 : index
    %c0_68 = arith.constant 0 : index
    %c0_69 = arith.constant 0 : index
    %71 = vector.load %arg1[%c3_66, %c1_67, %c0_68, %c0_69] : memref<4x9x9x8xf32, #tpu.memory_space<vmem>>, vector<1x8x8x8xf32>
    %72 = vector.shape_cast %71 : vector<1x8x8x8xf32> to vector<8x8x8xf32>
    %cst_70 = arith.constant 4.687500e-02 : f32
    %73 = vector.broadcast %cst_70 : f32 to vector<8x8x8xf32>
    %74 = arith.mulf %73, %72 : vector<8x8x8xf32>
    %75 = arith.addf %70, %74 : vector<8x8x8xf32>
    %c3_71 = arith.constant 3 : index
    %c1_72 = arith.constant 1 : index
    %c1_73 = arith.constant 1 : index
    %c0_74 = arith.constant 0 : index
    %76 = vector.load %arg1[%c3_71, %c1_72, %c1_73, %c0_74] : memref<4x9x9x8xf32, #tpu.memory_space<vmem>>, vector<1x8x8x8xf32>
    %77 = vector.shape_cast %76 : vector<1x8x8x8xf32> to vector<8x8x8xf32>
    %cst_75 = arith.constant 1.562500e-02 : f32
    %78 = vector.broadcast %cst_75 : f32 to vector<8x8x8xf32>
    %79 = arith.mulf %78, %77 : vector<8x8x8xf32>
    %80 = arith.addf %75, %79 : vector<8x8x8xf32>
    %c0_76 = arith.constant 0 : index
    %c0_77 = arith.constant 0 : index
    %c0_78 = arith.constant 0 : index
    %81 = vector.load %arg2[%c0_76, %c0_77, %c0_78] : memref<8x8x8xf32, #tpu.memory_space<vmem>>, vector<8x8x8xf32>
    tpu.vector_store %arg2[%c0_76, %c0_77, %c0_78], %80 {strides = array<i32>} : memref<8x8x8xf32, #tpu.memory_space<vmem>>, vector<8x8x8xf32>,
    return
  }
  func.func @transform_0(%arg0: i32) -> (i32, i32, i32, i32) {
    %c0_i32 = arith.constant 0 : i32
    %c0_i32_0 = arith.constant 0 : i32
    %c0_i32_1 = arith.constant 0 : i32
    %c0_i32_2 = arith.constant 0 : i32
    return %c0_i32, %c0_i32_0, %c0_i32_1, %arg0 : i32, i32, i32, i32
  }
  func.func @transform_1(%arg0: i32) -> (i32, i32, i32) {
    %c0_i32 = arith.constant 0 : i32
    %c0_i32_0 = arith.constant 0 : i32
    %c0_i32_1 = arith.constant 0 : i32
    return %c0_i32, %c0_i32_0, %arg0 : i32, i32, i32
  }
}

</mosaic_0001>

<llo_original>
// kernel: tpu_custom_call.1
$region0: #{tpu_custom_call.1}
  #allocation0 [shape = 'u32[]', space=smem, size = 0x4, offset = 0x4, fixed_abs, tag = 'smem constant byte address 0x4 - core index']
  #allocation1 [shape = 'u32[144,128]{1,0:T(1,128)}', space=vmem, size = 0x12000, scoped, tag = 'internal scratch']
  %s0 = inlined_call_operand.vmem [shape: f32[4,9,9,8], index: 0, kind: input, shape index: {}]
  %s1 = inlined_call_operand.hbm [shape: f32[8,8,8], index: 1, kind: output, shape index: {}]
  %s2 = sld [smem:[#allocation0]]
  $region14: #{tpu_custom_call.1} parent=0
    _
  %s4 = ssub.s32 1, %s2
  %s5 = scalar_select 0, %s4, %s2
  $region1: #{tpu_custom_call.1} parent=0
    #allocation2 [shape = 'u8[32768]{0}', space=vmem, size = 0x8000, scoped, tag = 'output window, operand 0, single buffered']
    #allocation3 [shape = 's32[1]{0}', space=sflag, size = 0x4, scoped, tag = 'scoped memory for tpu_custom_call.1']
    %6 = vsyncpa [#allocation3], 0
    // Predicated region
    $region2: #{tpu_custom_call.1} parent=1 // pred_check
      _
    $region3: #{tpu_custom_call.1} parent=1 // pred_check_branch
      %8 = sbr.rel (0) target = $region5
    $region4: #{tpu_custom_call.1} parent=1 // pred_region
      _
    $region5: #{tpu_custom_call.1} parent=1 // pred_fallthru
      _
    %v9 = vld [vmem:[%s0] sm:$0xff]
    %v10 = vld [vmem:[%s0 + $0x10] sm:$0xff]
    %v11 = vld [vmem:[%s0 + $0x20] sm:$0xff]
    %v12 = vld [vmem:[%s0 + $0x30] sm:$0xff]
    %v13 = vld [vmem:[%s0 + $0x40] sm:$0xff]
    %v14 = vld [vmem:[%s0 + $0x50] sm:$0xff]
    %v15 = vld [vmem:[%s0 + $0x60] sm:$0xff]
    %v16 = vld [vmem:[%s0 + $0x70] sm:$0xff]
    %v17 = vmul.f32 %v9, 0.015625
    %v18 = vmul.f32 %v10, 0.015625
    %v19 = vmul.f32 %v11, 0.015625
    %v20 = vmul.f32 %v12, 0.015625
    %v21 = vmul.f32 %v13, 0.015625
    %v22 = vmul.f32 %v14, 0.015625
    %v23 = vmul.f32 %v15, 0.015625
    %v24 = vmul.f32 %v16, 0.015625
    %v25 = vadd.f32 %v17, 0.0
    %v26 = vadd.f32 %v18, 0.0
    %v27 = vadd.f32 %v19, 0.0
    %v28 = vadd.f32 %v20, 0.0
    %v29 = vadd.f32 %v21, 0.0
    %v30 = vadd.f32 %v22, 0.0
    %v31 = vadd.f32 %v23, 0.0
    %v32 = vadd.f32 %v24, 0.0
    %v33 = vld [vmem:[%s0 + $0x1] sm:$0xff]
    %v34 = vld [vmem:[%s0 + $0x11] sm:$0xff]
    %v35 = vld [vmem:[%s0 + $0x21] sm:$0xff]
    %v36 = vld [vmem:[%s0 + $0x31] sm:$0xff]
    %v37 = vld [vmem:[%s0 + $0x41] sm:$0xff]
    %v38 = vld [vmem:[%s0 + $0x51] sm:$0xff]
    %v39 = vld [vmem:[%s0 + $0x61] sm:$0xff]
    %v40 = vld [vmem:[%s0 + $0x71] sm:$0xff]
    %v41 = vmul.f32 %v33, 0.046875
    %v42 = vmul.f32 %v34, 0.046875
    %v43 = vmul.f32 %v35, 0.046875
    %v44 = vmul.f32 %v36, 0.046875
    %v45 = vmul.f32 %v37, 0.046875
    %v46 = vmul.f32 %v38, 0.046875
    %v47 = vmul.f32 %v39, 0.046875
    %v48 = vmul.f32 %v40, 0.046875
    %v49 = vadd.f32 %v25, %v41
    %v50 = vadd.f32 %v26, %v42
    %v51 = vadd.f32 %v27, %v43
    %v52 = vadd.f32 %v28, %v44
    %v53 = vadd.f32 %v29, %v45
    %v54 = vadd.f32 %v30, %v46
    %v55 = vadd.f32 %v31, %v47
    %v56 = vadd.f32 %v32, %v48
    %s57 = scalar_lea.vmem %s0, 16
    %v58 = vld [vmem:[%s57] sm:$0xff]
    %v59 = vld [vmem:[%s57 + $0x10] sm:$0xff]
    %v60 = vld [vmem:[%s57 + $0x20] sm:$0xff]
    %v61 = vld [vmem:[%s57 + $0x30] sm:$0xff]
    %v62 = vld [vmem:[%s57 + $0x40] sm:$0xff]
    %v63 = vld [vmem:[%s57 + $0x50] sm:$0xff]
    %v64 = vld [vmem:[%s57 + $0x60] sm:$0xff]
    %v65 = vld [vmem:[%s57 + $0x70] sm:$0xff]
    %v66 = vmul.f32 %v58, 0.046875
    %v67 = vmul.f32 %v59, 0.046875
    %v68 = vmul.f32 %v60, 0.046875
    %v69 = vmul.f32 %v61, 0.046875
    %v70 = vmul.f32 %v62, 0.046875
    %v71 = vmul.f32 %v63, 0.046875
    %v72 = vmul.f32 %v64, 0.046875
    %v73 = vmul.f32 %v65, 0.046875
    %v74 = vadd.f32 %v49, %v66
    %v75 = vadd.f32 %v50, %v67
    %v76 = vadd.f32 %v51, %v68
    %v77 = vadd.f32 %v52, %v69
    %v78 = vadd.f32 %v53, %v70
    %v79 = vadd.f32 %v54, %v71
    %v80 = vadd.f32 %v55, %v72
    %v81 = vadd.f32 %v56, %v73
    %v82 = vld [vmem:[%s57 + $0x1] sm:$0xff]
    %v83 = vld [vmem:[%s57 + $0x11] sm:$0xff]
    %v84 = vld [vmem:[%s57 + $0x21] sm:$0xff]
    %v85 = vld [vmem:[%s57 + $0x31] sm:$0xff]
    %v86 = vld [vmem:[%s57 + $0x41] sm:$0xff]
    %v87 = vld [vmem:[%s57 + $0x51] sm:$0xff]
    %v88 = vld [vmem:[%s57 + $0x61] sm:$0xff]
    %v89 = vld [vmem:[%s57 + $0x71] sm:$0xff]
    %v90 = vmul.f32 %v82, 0.140625
    %v91 = vmul.f32 %v83, 0.140625
    %v92 = vmul.f32 %v84, 0.140625
    %v93 = vmul.f32 %v85, 0.140625
    %v94 = vmul.f32 %v86, 0.140625
    %v95 = vmul.f32 %v87, 0.140625
    %v96 = vmul.f32 %v88, 0.140625
    %v97 = vmul.f32 %v89, 0.140625
    %v98 = vadd.f32 %v74, %v90
    %v99 = vadd.f32 %v75, %v91
    %v100 = vadd.f32 %v76, %v92
    %v101 = vadd.f32 %v77, %v93
    %v102 = vadd.f32 %v78, %v94
    %v103 = vadd.f32 %v79, %v95
    %v104 = vadd.f32 %v80, %v96
    %v105 = vadd.f32 %v81, %v97
    %s106 = scalar_lea.vmem %s0, 144
    %v107 = vld [vmem:[%s106] sm:$0xff]
    %v108 = vld [vmem:[%s106 + $0x10] sm:$0xff]
    %v109 = vld [vmem:[%s106 + $0x20] sm:$0xff]
    %v110 = vld [vmem:[%s106 + $0x30] sm:$0xff]
    %v111 = vld [vmem:[%s106 + $0x40] sm:$0xff]
    %v112 = vld [vmem:[%s106 + $0x50] sm:$0xff]
    %v113 = vld [vmem:[%s106 + $0x60] sm:$0xff]
    %v114 = vld [vmem:[%s106 + $0x70] sm:$0xff]
    %v115 = vmul.f32 %v107, 0.046875
    %v116 = vmul.f32 %v108, 0.046875
    %v117 = vmul.f32 %v109, 0.046875
    %v118 = vmul.f32 %v110, 0.046875
    %v119 = vmul.f32 %v111, 0.046875
    %v120 = vmul.f32 %v112, 0.046875
    %v121 = vmul.f32 %v113, 0.046875
    %v122 = vmul.f32 %v114, 0.046875
    %v123 = vadd.f32 %v98, %v115
    %v124 = vadd.f32 %v99, %v116
    %v125 = vadd.f32 %v100, %v117
    %v126 = vadd.f32 %v101, %v118
    %v127 = vadd.f32 %v102, %v119
    %v128 = vadd.f32 %v103, %v120
    %v129 = vadd.f32 %v104, %v121
    %v130 = vadd.f32 %v105, %v122
    %v131 = vld [vmem:[%s106 + $0x1] sm:$0xff]
    %v132 = vld [vmem:[%s106 + $0x11] sm:$0xff]
    %v133 = vld [vmem:[%s106 + $0x21] sm:$0xff]
    %v134 = vld [vmem:[%s106 + $0x31] sm:$0xff]
    %v135 = vld [vmem:[%s106 + $0x41] sm:$0xff]
    %v136 = vld [vmem:[%s106 + $0x51] sm:$0xff]
    %v137 = vld [vmem:[%s106 + $0x61] sm:$0xff]
    %v138 = vld [vmem:[%s106 + $0x71] sm:$0xff]
    %v139 = vmul.f32 %v131, 0.015625
    %v140 = vmul.f32 %v132, 0.015625
    %v141 = vmul.f32 %v133, 0.015625
    %v142 = vmul.f32 %v134, 0.015625
    %v143 = vmul.f32 %v135, 0.015625
    %v144 = vmul.f32 %v136, 0.015625
    %v145 = vmul.f32 %v137, 0.015625
    %v146 = vmul.f32 %v138, 0.015625
    %v147 = vadd.f32 %v123, %v139
    %v148 = vadd.f32 %v124, %v140
    %v149 = vadd.f32 %v125, %v141
    %v150 = vadd.f32 %v126, %v142
    %v151 = vadd.f32 %v127, %v143
    %v152 = vadd.f32 %v128, %v144
    %v153 = vadd.f32 %v129, %v145
    %v154 = vadd.f32 %v130, %v146
    %s155 = scalar_lea.vmem %s0, 160
    %v156 = vld [vmem:[%s155] sm:$0xff]
    %v157 = vld [vmem:[%s155 + $0x10] sm:$0xff]
    %v158 = vld [vmem:[%s155 + $0x20] sm:$0xff]
    %v159 = vld [vmem:[%s155 + $0x30] sm:$0xff]
    %v160 = vld [vmem:[%s155 + $0x40] sm:$0xff]
    %v161 = vld [vmem:[%s155 + $0x50] sm:$0xff]
    %v162 = vld [vmem:[%s155 + $0x60] sm:$0xff]
    %v163 = vld [vmem:[%s155 + $0x70] sm:$0xff]
    %v164 = vmul.f32 %v156, 0.140625
    %v165 = vmul.f32 %v157, 0.140625
    %v166 = vmul.f32 %v158, 0.140625
    %v167 = vmul.f32 %v159, 0.140625
    %v168 = vmul.f32 %v160, 0.140625
    %v169 = vmul.f32 %v161, 0.140625
    %v170 = vmul.f32 %v162, 0.140625
    %v171 = vmul.f32 %v163, 0.140625
    %v172 = vadd.f32 %v147, %v164
    %v173 = vadd.f32 %v148, %v165
    %v174 = vadd.f32 %v149, %v166
    %v175 = vadd.f32 %v150, %v167
    %v176 = vadd.f32 %v151, %v168
    %v177 = vadd.f32 %v152, %v169
    %v178 = vadd.f32 %v153, %v170
    %v179 = vadd.f32 %v154, %v171
    %v180 = vld [vmem:[%s155 + $0x1] sm:$0xff]
    %v181 = vld [vmem:[%s155 + $0x11] sm:$0xff]
    %v182 = vld [vmem:[%s155 + $0x21] sm:$0xff]
    %v183 = vld [vmem:[%s155 + $0x31] sm:$0xff]
    %v184 = vld [vmem:[%s155 + $0x41] sm:$0xff]
    %v185 = vld [vmem:[%s155 + $0x51] sm:$0xff]
    %v186 = vld [vmem:[%s155 + $0x61] sm:$0xff]
    %v187 = vld [vmem:[%s155 + $0x71] sm:$0xff]
    %v188 = vmul.f32 %v180, 0.046875
    %v189 = vmul.f32 %v181, 0.046875
    %v190 = vmul.f32 %v182, 0.046875
    %v191 = vmul.f32 %v183, 0.046875
    %v192 = vmul.f32 %v184, 0.046875
    %v193 = vmul.f32 %v185, 0.046875
    %v194 = vmul.f32 %v186, 0.046875
    %v195 = vmul.f32 %v187, 0.046875
    %v196 = vadd.f32 %v172, %v188
    %v197 = vadd.f32 %v173, %v189
    %v198 = vadd.f32 %v174, %v190
    %v199 = vadd.f32 %v175, %v191
    %v200 = vadd.f32 %v176, %v192
    %v201 = vadd.f32 %v177, %v193
    %v202 = vadd.f32 %v178, %v194
    %v203 = vadd.f32 %v179, %v195
    %s204 = scalar_lea.vmem %s0, 288
    %v205 = vld [vmem:[%s204] sm:$0xff]
    %v206 = vld [vmem:[%s204 + $0x10] sm:$0xff]
    %v207 = vld [vmem:[%s204 + $0x20] sm:$0xff]
    %v208 = vld [vmem:[%s204 + $0x30] sm:$0xff]
    %v209 = vld [vmem:[%s204 + $0x40] sm:$0xff]
    %v210 = vld [vmem:[%s204 + $0x50] sm:$0xff]
    %v211 = vld [vmem:[%s204 + $0x60] sm:$0xff]
    %v212 = vld [vmem:[%s204 + $0x70] sm:$0xff]
    %v213 = vmul.f32 %v205, 0.046875
    %v214 = vmul.f32 %v206, 0.046875
    %v215 = vmul.f32 %v207, 0.046875
    %v216 = vmul.f32 %v208, 0.046875
    %v217 = vmul.f32 %v209, 0.046875
    %v218 = vmul.f32 %v210, 0.046875
    %v219 = vmul.f32 %v211, 0.046875
    %v220 = vmul.f32 %v212, 0.046875
    %v221 = vadd.f32 %v196, %v213
    %v222 = vadd.f32 %v197, %v214
    %v223 = vadd.f32 %v198, %v215
    %v224 = vadd.f32 %v199, %v216
    %v225 = vadd.f32 %v200, %v217
    %v226 = vadd.f32 %v201, %v218
    %v227 = vadd.f32 %v202, %v219
    %v228 = vadd.f32 %v203, %v220
    %v229 = vld [vmem:[%s204 + $0x1] sm:$0xff]
    %v230 = vld [vmem:[%s204 + $0x11] sm:$0xff]
    %v231 = vld [vmem:[%s204 + $0x21] sm:$0xff]
    %v232 = vld [vmem:[%s204 + $0x31] sm:$0xff]
    %v233 = vld [vmem:[%s204 + $0x41] sm:$0xff]
    %v234 = vld [vmem:[%s204 + $0x51] sm:$0xff]
    %v235 = vld [vmem:[%s204 + $0x61] sm:$0xff]
    %v236 = vld [vmem:[%s204 + $0x71] sm:$0xff]
    %v237 = vmul.f32 %v229, 0.140625
    %v238 = vmul.f32 %v230, 0.140625
    %v239 = vmul.f32 %v231, 0.140625
    %v240 = vmul.f32 %v232, 0.140625
    %v241 = vmul.f32 %v233, 0.140625
    %v242 = vmul.f32 %v234, 0.140625
    %v243 = vmul.f32 %v235, 0.140625
    %v244 = vmul.f32 %v236, 0.140625
    %v245 = vadd.f32 %v221, %v237
    %v246 = vadd.f32 %v222, %v238
    %v247 = vadd.f32 %v223, %v239
    %v248 = vadd.f32 %v224, %v240
    %v249 = vadd.f32 %v225, %v241
    %v250 = vadd.f32 %v226, %v242
    %v251 = vadd.f32 %v227, %v243
    %v252 = vadd.f32 %v228, %v244
    %s253 = scalar_lea.vmem %s0, 304
    %v254 = vld [vmem:[%s253] sm:$0xff]
    %v255 = vld [vmem:[%s253 + $0x10] sm:$0xff]
    %v256 = vld [vmem:[%s253 + $0x20] sm:$0xff]
    %v257 = vld [vmem:[%s253 + $0x30] sm:$0xff]
    %v258 = vld [vmem:[%s253 + $0x40] sm:$0xff]
    %v259 = vld [vmem:[%s253 + $0x50] sm:$0xff]
    %v260 = vld [vmem:[%s253 + $0x60] sm:$0xff]
    %v261 = vld [vmem:[%s253 + $0x70] sm:$0xff]
    %v262 = vmul.f32 %v254, 0.015625
    %v263 = vmul.f32 %v255, 0.015625
    %v264 = vmul.f32 %v256, 0.015625
    %v265 = vmul.f32 %v257, 0.015625
    %v266 = vmul.f32 %v258, 0.015625
    %v267 = vmul.f32 %v259, 0.015625
    %v268 = vmul.f32 %v260, 0.015625
    %v269 = vmul.f32 %v261, 0.015625
    %v270 = vadd.f32 %v245, %v262
    %v271 = vadd.f32 %v246, %v263
    %v272 = vadd.f32 %v247, %v264
    %v273 = vadd.f32 %v248, %v265
    %v274 = vadd.f32 %v249, %v266
    %v275 = vadd.f32 %v250, %v267
    %v276 = vadd.f32 %v251, %v268
    %v277 = vadd.f32 %v252, %v269
    %v278 = vld [vmem:[%s253 + $0x1] sm:$0xff]
    %v279 = vld [vmem:[%s253 + $0x11] sm:$0xff]
    %v280 = vld [vmem:[%s253 + $0x21] sm:$0xff]
    %v281 = vld [vmem:[%s253 + $0x31] sm:$0xff]
    %v282 = vld [vmem:[%s253 + $0x41] sm:$0xff]
    %v283 = vld [vmem:[%s253 + $0x51] sm:$0xff]
    %v284 = vld [vmem:[%s253 + $0x61] sm:$0xff]
    %v285 = vld [vmem:[%s253 + $0x71] sm:$0xff]
    %v286 = vmul.f32 %v278, 0.046875
    %v287 = vmul.f32 %v279, 0.046875
    %v288 = vmul.f32 %v280, 0.046875
    %v289 = vmul.f32 %v281, 0.046875
    %v290 = vmul.f32 %v282, 0.046875
    %v291 = vmul.f32 %v283, 0.046875
    %v292 = vmul.f32 %v284, 0.046875
    %v293 = vmul.f32 %v285, 0.046875
    %v294 = vadd.f32 %v270, %v286
    %v295 = vadd.f32 %v271, %v287
    %v296 = vadd.f32 %v272, %v288
    %v297 = vadd.f32 %v273, %v289
    %v298 = vadd.f32 %v274, %v290
    %v299 = vadd.f32 %v275, %v291
    %v300 = vadd.f32 %v276, %v292
    %v301 = vadd.f32 %v277, %v293
    %s302 = scalar_lea.vmem %s0, 432
    %v303 = vld [vmem:[%s302] sm:$0xff]
    %v304 = vld [vmem:[%s302 + $0x10] sm:$0xff]
    %v305 = vld [vmem:[%s302 + $0x20] sm:$0xff]
    %v306 = vld [vmem:[%s302 + $0x30] sm:$0xff]
    %v307 = vld [vmem:[%s302 + $0x40] sm:$0xff]
    %v308 = vld [vmem:[%s302 + $0x50] sm:$0xff]
    %v309 = vld [vmem:[%s302 + $0x60] sm:$0xff]
    %v310 = vld [vmem:[%s302 + $0x70] sm:$0xff]
    %v311 = vmul.f32 %v303, 0.140625
    %v312 = vmul.f32 %v304, 0.140625
    %v313 = vmul.f32 %v305, 0.140625
    %v314 = vmul.f32 %v306, 0.140625
    %v315 = vmul.f32 %v307, 0.140625
    %v316 = vmul.f32 %v308, 0.140625
    %v317 = vmul.f32 %v309, 0.140625
    %v318 = vmul.f32 %v310, 0.140625
    %v319 = vadd.f32 %v294, %v311
    %v320 = vadd.f32 %v295, %v312
    %v321 = vadd.f32 %v296, %v313
    %v322 = vadd.f32 %v297, %v314
    %v323 = vadd.f32 %v298, %v315
    %v324 = vadd.f32 %v299, %v316
    %v325 = vadd.f32 %v300, %v317
    %v326 = vadd.f32 %v301, %v318
    %v327 = vld [vmem:[%s302 + $0x1] sm:$0xff]
    %v328 = vld [vmem:[%s302 + $0x11] sm:$0xff]
    %v329 = vld [vmem:[%s302 + $0x21] sm:$0xff]
    %v330 = vld [vmem:[%s302 + $0x31] sm:$0xff]
    %v331 = vld [vmem:[%s302 + $0x41] sm:$0xff]
    %v332 = vld [vmem:[%s302 + $0x51] sm:$0xff]
    %v333 = vld [vmem:[%s302 + $0x61] sm:$0xff]
    %v334 = vld [vmem:[%s302 + $0x71] sm:$0xff]
    %v335 = vmul.f32 %v327, 0.046875
    %v336 = vmul.f32 %v328, 0.046875
    %v337 = vmul.f32 %v329, 0.046875
    %v338 = vmul.f32 %v330, 0.046875
    %v339 = vmul.f32 %v331, 0.046875
    %v340 = vmul.f32 %v332, 0.046875
    %v341 = vmul.f32 %v333, 0.046875
    %v342 = vmul.f32 %v334, 0.046875
    %v343 = vadd.f32 %v319, %v335
    %v344 = vadd.f32 %v320, %v336
    %v345 = vadd.f32 %v321, %v337
    %v346 = vadd.f32 %v322, %v338
    %v347 = vadd.f32 %v323, %v339
    %v348 = vadd.f32 %v324, %v340
    %v349 = vadd.f32 %v325, %v341
    %v350 = vadd.f32 %v326, %v342
    %s351 = scalar_lea.vmem %s0, 448
    %v352 = vld [vmem:[%s351] sm:$0xff]
    %v353 = vld [vmem:[%s351 + $0x10] sm:$0xff]
    %v354 = vld [vmem:[%s351 + $0x20] sm:$0xff]
    %v355 = vld [vmem:[%s351 + $0x30] sm:$0xff]
    %v356 = vld [vmem:[%s351 + $0x40] sm:$0xff]
    %v357 = vld [vmem:[%s351 + $0x50] sm:$0xff]
    %v358 = vld [vmem:[%s351 + $0x60] sm:$0xff]
    %v359 = vld [vmem:[%s351 + $0x70] sm:$0xff]
    %v360 = vmul.f32 %v352, 0.046875
    %v361 = vmul.f32 %v353, 0.046875
    %v362 = vmul.f32 %v354, 0.046875
    %v363 = vmul.f32 %v355, 0.046875
    %v364 = vmul.f32 %v356, 0.046875
    %v365 = vmul.f32 %v357, 0.046875
    %v366 = vmul.f32 %v358, 0.046875
    %v367 = vmul.f32 %v359, 0.046875
    %v368 = vadd.f32 %v343, %v360
    %v369 = vadd.f32 %v344, %v361
    %v370 = vadd.f32 %v345, %v362
    %v371 = vadd.f32 %v346, %v363
    %v372 = vadd.f32 %v347, %v364
    %v373 = vadd.f32 %v348, %v365
    %v374 = vadd.f32 %v349, %v366
    %v375 = vadd.f32 %v350, %v367
    %v376 = vld [vmem:[%s351 + $0x1] sm:$0xff]
    %v377 = vld [vmem:[%s351 + $0x11] sm:$0xff]
    %v378 = vld [vmem:[%s351 + $0x21] sm:$0xff]
    %v379 = vld [vmem:[%s351 + $0x31] sm:$0xff]
    %v380 = vld [vmem:[%s351 + $0x41] sm:$0xff]
    %v381 = vld [vmem:[%s351 + $0x51] sm:$0xff]
    %v382 = vld [vmem:[%s351 + $0x61] sm:$0xff]
    %v383 = vld [vmem:[%s351 + $0x71] sm:$0xff]
    %v384 = vmul.f32 %v376, 0.015625
    %v385 = vmul.f32 %v377, 0.015625
    %v386 = vmul.f32 %v378, 0.015625
    %v387 = vmul.f32 %v379, 0.015625
    %v388 = vmul.f32 %v380, 0.015625
    %v389 = vmul.f32 %v381, 0.015625
    %v390 = vmul.f32 %v382, 0.015625
    %v391 = vmul.f32 %v383, 0.015625
    %v392 = vadd.f32 %v368, %v384
    %v393 = vadd.f32 %v369, %v385
    %v394 = vadd.f32 %v370, %v386
    %v395 = vadd.f32 %v371, %v387
    %v396 = vadd.f32 %v372, %v388
    %v397 = vadd.f32 %v373, %v389
    %v398 = vadd.f32 %v374, %v390
    %v399 = vadd.f32 %v375, %v391
    %vm400 = vcmask 64512
    %401 = vst.msk [vmem:[#allocation2] sm:$0xff] %vm400, %v392
    %402 = vst.msk [vmem:[#allocation2 + $0x8] sm:$0xff] %vm400, %v393
    %403 = vst.msk [vmem:[#allocation2 + $0x10] sm:$0xff] %vm400, %v394
    %404 = vst.msk [vmem:[#allocation2 + $0x18] sm:$0xff] %vm400, %v395
    %405 = vst.msk [vmem:[#allocation2 + $0x20] sm:$0xff] %vm400, %v396
    %406 = vst.msk [vmem:[#allocation2 + $0x28] sm:$0xff] %vm400, %v397
    %407 = vst.msk [vmem:[#allocation2 + $0x30] sm:$0xff] %vm400, %v398
    %408 = vst.msk [vmem:[#allocation2 + $0x38] sm:$0xff] %vm400, %v399
    // Predicated region
    $region6: #{tpu_custom_call.1} parent=1 // pred_check
      _
    $region7: #{tpu_custom_call.1} parent=1 // pred_check_branch
      %410 = sbr.rel (0) target = $region9
    $region8: #{tpu_custom_call.1} parent=1 // pred_region
      %s412 = ssub.s32 1024, 1024
      %413 = vsyncadd [#allocation3], %s412
      %s414 = sshll.u32 [#allocation2], 4
      %s415 = int_to_ptr.vmem [resolvable:$true] %s414
      %420 = dma.vmem_to_hbm [thread:$0]  %s415, 1024, %s1, [#allocation3], 128, 128, 8
    $region9: #{tpu_custom_call.1} parent=1 // pred_fallthru
      _
    // Predicated region
    $region10: #{tpu_custom_call.1} parent=1 // pred_check
      _
    $region11: #{tpu_custom_call.1} parent=1 // pred_check_branch
      %422 = sbr.rel (0) target = $region13
    $region12: #{tpu_custom_call.1} parent=1 // pred_region
      %423 = dma.done [#allocation3], 1024
    $region13: #{tpu_custom_call.1} parent=1 // pred_fallthru
      _
    %424 = vsyncpa [#allocation3], 1

</llo_original>
